<compile_context>
chip_gen: v7x
topology: tpu7x:2x2x1
jax: 0.10.0
libtpu: 0.0.40
codegen_flags: <defaults>
</compile_context>

<pallas_src>
import functools

import jax
import jax.numpy as jnp
from jax import lax
from jax.experimental import pallas as pl
from jax.experimental.pallas import tpu as pltpu

BN_EPS = 1e-5
LANES = 128


def _round_up(x, m):
    return (x + m - 1) // m * m


# ---------------------------------------------------------------------------
# Probe: can this build single-buffer constant-index operands (pl.Buffered(1))?
# ---------------------------------------------------------------------------
def _probe_copy_kernel(x_ref, o_ref):
    o_ref[...] = x_ref[...]


@functools.lru_cache(maxsize=1)
def _single_buffer_supported():
    try:
        pl.pallas_call(
            _probe_copy_kernel,
            grid=(2,),
            in_specs=[pl.BlockSpec((8, LANES), lambda i: (0, 0),
                                   pipeline_mode=pl.Buffered(1))],
            out_specs=pl.BlockSpec((8, LANES), lambda i: (i, 0)),
            out_shape=jax.ShapeDtypeStruct((16, LANES), jnp.float32),
        )(jnp.zeros((8, LANES), jnp.float32)).block_until_ready()
        return True
    except Exception:  # pragma: no cover — fall back to default double-buffering
        return False


def _const_spec(shape, single_buffer):
    idx = lambda i: (0,) * len(shape)
    if single_buffer:
        return pl.BlockSpec(shape, idx, pipeline_mode=pl.Buffered(1))
    return pl.BlockSpec(shape, idx)


# ---------------------------------------------------------------------------
# Stage 1: partial-conv matmul + mask renormalisation (+ optional conv bias)
#          and per-tile BatchNorm partial statistics.
# ---------------------------------------------------------------------------
def _pconv_stage1_kernel(p_ref, msum_ref, w_ref, b_ref, h_ref, stats_ref):
    # p_ref    : (TR, FPAD)   im2col patches of x*mask (compute dtype)
    # msum_ref : (TR, 1)      f32 mask-window count (exact, from XLA)
    # w_ref    : (FPAD, CPAD) conv weight (compute dtype), zero padded
    # b_ref    : (1, CPAD)    conv bias row (zeros when conv_bias=False)
    # h_ref    : (TR, CPAD)   pre-BN partial-conv activations
    # stats_ref: (1, 8, CPAD) rows 0/1 = per-channel sum / sum-of-squares
    conv = jnp.dot(p_ref[...], w_ref[...],
                   preferred_element_type=jnp.float32)      # MXU, f32 accumulate

    msum = msum_ref[...]                                    # (TR, 1)
    holes = msum == 0.0
    denom = jnp.where(holes, 1.0, msum)
    recip = pl.reciprocal(denom, approx=True)               # EUP slot
    recip = recip * (2.0 - denom * recip)                   # 1 Newton step -> ~f32 exact

    h = jnp.where(holes, 0.0, conv * recip + b_ref[...])    # (TR, CPAD), f32
    h_ref[...] = h.astype(h_ref.dtype)

    # Per-tile BN partials in f32 from the un-rounded h (rows 2..7 unused).
    stats_ref[...] = jnp.zeros_like(stats_ref)
    stats_ref[0, 0:1, :] = jnp.sum(h, axis=0, keepdims=True)
    stats_ref[0, 1:2, :] = jnp.sum(h * h, axis=0, keepdims=True)


# ---------------------------------------------------------------------------
# Stage 2: fused BatchNorm affine (or identity) + activation, lane-dense store.
# ---------------------------------------------------------------------------
def _bn_act_stage2_kernel(h_ref, sc_ref, sh_ref, o_ref, *, act):
    y = h_ref[...].astype(jnp.float32) * sc_ref[...] + sh_ref[...]
    if act == "relu":
        y = jnp.maximum(y, 0.0)
    elif act == "leaky":
        y = jnp.maximum(y, 0.2 * y)
    o_ref[...] = y.astype(o_ref.dtype)


# ---------------------------------------------------------------------------
# Wrapper-side layout plumbing (cheap, fused by XLA).
# ---------------------------------------------------------------------------
def _im2col(x_nhwc, k, stride, pad):
    """(N,H,W,C) -> (N*Ho*Wo, K*K*C), feature order (kh, kw, c)."""
    n, h, w, c = x_nhwc.shape
    ho = (h + 2 * pad - k) // stride + 1
    wo = (w + 2 * pad - k) // stride + 1
    xp = jnp.pad(x_nhwc, ((0, 0), (pad, pad), (pad, pad), (0, 0)))
    cols = [xp[:, kh:kh + stride * (ho - 1) + 1:stride,
               kw:kw + stride * (wo - 1) + 1:stride, :]
            for kh in range(k) for kw in range(k)]
    patches = jnp.concatenate(cols, axis=-1).reshape(n * ho * wo, k * k * c)
    return patches, ho, wo


def pcb_activ(x_nchw, mask_nchw, weight_oihw, gamma=None, beta=None,
              conv_bias=None, *, kernel_size=3, stride=1, padding=1,
              bn=True, activ="relu", tile_rows=512, tile_rows_stage2=2048,
              compute_dtype=jnp.bfloat16, out_dtype=jnp.float32,
              vmem_budget_bytes=48 * 1024 * 1024):
    """Forward of PCBActiv(in_ch, out_ch, bn=bn, activ=activ, conv_bias=...):
    PartialConv(kernel_size, stride, padding) -> BatchNorm2d (training mode)
    -> activation.  NCHW in/out like PyTorch.  Returns (out, new_mask).

    compute_dtype (default bf16) sets the MXU operand dtype; accumulation and
    the renorm / BN / activation epilogue are always f32 (v5e-safe)."""
    n, cin, _, _ = x_nchw.shape
    cout = weight_oihw.shape[0]
    k = kernel_size
    cpad = _round_up(cout, LANES)
    feat = k * k * cin
    feat_pad = _round_up(feat, LANES)

    cdt = jnp.dtype(compute_dtype)
    h_store_dtype = cdt if cdt.itemsize < 4 else jnp.dtype(jnp.float32)

    # NHWC once; x*mask in compute_dtype BEFORE im2col (mask is 0/1 -> exact).
    m = jnp.transpose(mask_nchw, (0, 2, 3, 1)).astype(jnp.float32)
    xm = (jnp.transpose(x_nchw, (0, 2, 3, 1)).astype(jnp.float32)
          * m).astype(compute_dtype)

    # Exact f32 mask-window count (== PyTorch's all-ones mask_conv output).
    msum_map = lax.reduce_window(
        jnp.sum(m, axis=-1, keepdims=True), 0.0, lax.add,
        (1, k, k, 1), (1, stride, stride, 1),
        ((0, 0), (padding, padding), (padding, padding), (0, 0)))
    ho, wo = msum_map.shape[1], msum_map.shape[2]
    r_rows = n * ho * wo
    msum_flat = msum_map.reshape(r_rows, 1)

    # TODO(synk): replace this XLA-side im2col (K^2 input-byte amplification)
    # with an in-kernel haloed NHWC tile + K*K shifted MXU dots.
    patches, ho2, wo2 = _im2col(xm, k, stride, padding)
    assert (ho2, wo2) == (ho, wo)

    cbytes = cdt.itemsize
    hbytes = jnp.dtype(h_store_dtype).itemsize
    obytes = jnp.dtype(out_dtype).itemsize
    single_buf = _single_buffer_supported()
    wbuf = 1 if single_buf else 2

    # Row tiling: multiples of 16 (bf16 sublane pack); stage-2 tiles are a
    # multiple of stage-1 tiles so one padded R serves both grids.  Tiles are
    # auto-halved until the per-stage working set fits vmem_budget_bytes.
    tr1 = max(16, min(_round_up(tile_rows, 16), _round_up(r_rows, 16)))

    def est1(tr):
        return (2 * tr * feat_pad * cbytes          # patch tile (double buffer)
                + 2 * tr * LANES * 4                # msum tile (lane-padded)
                + wbuf * feat_pad * cpad * cbytes   # resident weight
                + wbuf * 8 * cpad * 4               # resident bias row
                + 2 * tr * cpad * hbytes            # h output tile
                + 2 * 8 * cpad * 4)                 # stats output tile

    while est1(tr1) > vmem_budget_bytes and tr1 > 16:
        tr1 = max(16, _round_up(tr1 // 2, 16))

    tr2 = max(tr1, min(_round_up(tile_rows_stage2, tr1), _round_up(r_rows, tr1)))

    def est2(tr):
        return (2 * tr * cpad * hbytes + 2 * tr * cpad * obytes
                + 2 * wbuf * 8 * cpad * 4)

    while est2(tr2) > vmem_budget_bytes and tr2 > tr1:
        tr2 = max(tr1, _round_up(tr2 // 2, tr1))

    r_pad = _round_up(r_rows, tr2)
    nt1, nt2 = r_pad // tr1, r_pad // tr2

    # Padded rows are zero patches with msum == 0 -> h == 0 exactly, so they
    # perturb neither the BN partial sums nor the outputs (sliced off below).
    patches = jnp.pad(patches, ((0, r_pad - r_rows), (0, feat_pad - feat)))
    msum_rows = jnp.pad(msum_flat, ((0, r_pad - r_rows), (0, 0)))

    # Weight (feat_pad, cpad): real filters in [:feat, :cout], zeros elsewhere.
    w_flat = jnp.transpose(weight_oihw, (2, 3, 1, 0)).reshape(feat, cout)
    w_aug = (jnp.zeros((feat_pad, cpad), jnp.float32)
             .at[:feat, :cout].set(w_flat.astype(jnp.float32))
             .astype(compute_dtype))
    bias_row = jnp.zeros((1, cpad), jnp.float32)
    if conv_bias is not None:
        bias_row = bias_row.at[0, :cout].set(conv_bias.astype(jnp.float32))

    params1 = pltpu.CompilerParams(
        dimension_semantics=("parallel",),           # both v7x TensorCores
        vmem_limit_bytes=int(max(est1(tr1) + (8 << 20), 16 << 20)))

    # ---- stage 1: partial conv + renorm (+bias) + BN partial sums ----------
    h_pre, stats = pl.pallas_call(
        _pconv_stage1_kernel,
        grid=(nt1,),
        in_specs=[
            pl.BlockSpec((tr1, feat_pad), lambda i: (i, 0)),
            pl.BlockSpec((tr1, 1), lambda i: (i, 0)),
            _const_spec((feat_pad, cpad), single_buf),   # resident weight
            _const_spec((1, cpad), single_buf),          # resident bias
        ],
        out_specs=(
            pl.BlockSpec((tr1, cpad), lambda i: (i, 0)),
            pl.BlockSpec((1, 8, cpad), lambda i: (i, 0, 0)),
        ),
        out_shape=(
            jax.ShapeDtypeStruct((r_pad, cpad), h_store_dtype),
            jax.ShapeDtypeStruct((nt1, 8, cpad), jnp.float32),
        ),
        compiler_params=params1,
    )(patches, msum_rows, w_aug, bias_row)

    # new_mask from the exact window count (identical per output channel).
    # TODO(synk): for chained UNet layers carry this 1-channel mask (and NHWC
    # bf16 activations) between pcb_activ calls instead of broadcasting /
    # transposing back to NCHW every layer.
    new_mask = (msum_flat[:, 0] > 0.0).astype(x_nchw.dtype).reshape(n, ho, wo)
    new_mask = jnp.broadcast_to(new_mask[:, None], (n, cout, ho, wo))

    # ---- tiny cross-tile BN reduction (Chan combine) + scale/shift folding --
    if bn:
        gamma_f = (jnp.ones((cout,), jnp.float32) if gamma is None
                   else gamma.astype(jnp.float32))
        beta_f = (jnp.zeros((cout,), jnp.float32) if beta is None
                  else beta.astype(jnp.float32))
        s1 = stats[:, 0, :cout]                          # (T, cout)
        s2 = stats[:, 1, :cout]
        cnt = jnp.clip(r_rows - jnp.arange(nt1) * tr1, 0, tr1
                       ).astype(jnp.float32)[:, None]    # valid rows per tile
        mean_t = s1 / jnp.maximum(cnt, 1.0)
        m2_t = jnp.maximum(s2 - s1 * mean_t, 0.0)        # centered per-tile SS
        total = float(r_rows)
        mean = jnp.sum(s1, axis=0) / total
        m2 = (jnp.sum(m2_t, axis=0)
              + jnp.sum(cnt * (mean_t - mean[None, :]) ** 2, axis=0))
        var = jnp.maximum(m2 / total, 0.0)               # biased (PyTorch train)
        inv = lax.rsqrt(var + BN_EPS)
        scale_c = gamma_f * inv
        shift_c = beta_f - mean * scale_c
    else:
        scale_c = jnp.ones((cout,), jnp.float32)
        shift_c = jnp.zeros((cout,), jnp.float32)

    if (not bn) and (activ is None):
        out2d = h_pre[:r_rows, :cout].astype(out_dtype)  # e.g. dec_1 of the UNet
    else:
        scale_row = jnp.zeros((1, cpad), jnp.float32).at[0, :cout].set(scale_c)
        shift_row = jnp.zeros((1, cpad), jnp.float32).at[0, :cout].set(shift_c)
        params2 = pltpu.CompilerParams(
            dimension_semantics=("parallel",),
            vmem_limit_bytes=int(max(est2(tr2) + (8 << 20), 16 << 20)))
        # TODO(synk): alias the output onto h_pre (input_output_aliases={0: 0})
        # when h_store_dtype == out_dtype to drop one R x cpad HBM allocation.
        out_full = pl.pallas_call(
            functools.partial(_bn_act_stage2_kernel, act=activ),
            grid=(nt2,),
            in_specs=[
                pl.BlockSpec((tr2, cpad), lambda i: (i, 0)),
                _const_spec((1, cpad), single_buf),      # resident scale
                _const_spec((1, cpad), single_buf),      # resident shift
            ],
            out_specs=pl.BlockSpec((tr2, cpad), lambda i: (i, 0)),
            out_shape=jax.ShapeDtypeStruct((r_pad, cpad), out_dtype),
            compiler_params=params2,
        )(h_pre, scale_row, shift_row)
        out2d = out_full[:r_rows, :cout]

    out = jnp.transpose(out2d.reshape(n, ho, wo, cout), (0, 3, 1, 2))
    return out, new_mask


# ---------------------------------------------------------------------------
# Pure-JAX reference mirroring the PyTorch forward (NCHW).
# ---------------------------------------------------------------------------
def _reference(x, m, w_oihw, bias, gamma, beta, *, stride, padding, bn, activ):
    dn = ("NCHW", "OIHW", "NCHW")
    pads = ((padding, padding), (padding, padding))
    conv = lax.conv_general_dilated(x * m, w_oihw, (stride, stride), pads,
                                    dimension_numbers=dn)
    om = lax.conv_general_dilated(m, jnp.ones_like(w_oihw), (stride, stride),
                                  pads, dimension_numbers=dn)
    holes = om == 0.0
    msum = jnp.where(holes, 1.0, om)
    h = conv / msum
    if bias is not None:
        h = h + bias.reshape(1, -1, 1, 1)
    h = jnp.where(holes, 0.0, h)
    nm = jnp.where(holes, 0.0, 1.0)
    if bn:
        mean = jnp.mean(h, axis=(0, 2, 3), keepdims=True)
        var = jnp.mean((h - mean) ** 2, axis=(0, 2, 3), keepdims=True)
        h = ((h - mean) * lax.rsqrt(var + BN_EPS) * gamma.reshape(1, -1, 1, 1)
             + beta.reshape(1, -1, 1, 1))
    if activ == "relu":
        h = jnp.maximum(h, 0.0)
    elif activ == "leaky":
        h = jnp.maximum(h, 0.2 * h)
    return h, nm


if __name__ == "__main__":
    key = jax.random.PRNGKey(0)
    k_x, k_m, k_w, k_w5, k_b = jax.random.split(key, 5)

    N, CIN, COUT, H, W = 2, 4, 8, 16, 16

    x = jax.random.normal(k_x, (N, CIN, H, W), jnp.float32)

    # Binary mask shared across channels, with a hole big enough that some
    # receptive fields are fully masked (exercises the "no update" path).
    mask_hw = (jax.random.uniform(k_m, (N, 1, H, W)) > 0.25).astype(jnp.float32)
    mask_hw = mask_hw.at[:, :, 4:10, 4:10].set(0.0)
    mask = jnp.broadcast_to(mask_hw, (N, CIN, H, W))

    w3 = jax.random.normal(k_w, (COUT, CIN, 3, 3), jnp.float32) * jnp.sqrt(2.0 / (CIN * 9))
    w5 = jax.random.normal(k_w5, (COUT, CIN, 5, 5), jnp.float32) * jnp.sqrt(2.0 / (CIN * 25))
    bias = jax.random.normal(k_b, (COUT,), jnp.float32) * 0.1
    gamma = jnp.ones((COUT,), jnp.float32)    # BatchNorm2d init in PConvUNet
    beta = jnp.zeros((COUT,), jnp.float32)

    # 1) encoder-style 'none-3' block: PartialConv3x3 -> BN -> ReLU, f32 MXU
    #    operands (exact path).  tile_rows=96 -> 6 stage-1 tiles + row padding.
    out1, nm1 = pcb_activ(x, mask, w3, gamma, beta, tile_rows=96,
                          compute_dtype=jnp.float32)
    jax.block_until_ready((out1, nm1))
    ref_o, ref_m = _reference(x, mask, w3, None, gamma, beta,
                              stride=1, padding=1, bn=True, activ="relu")
    assert out1.shape == (N, COUT, H, W) and nm1.shape == (N, COUT, H, W)
    assert jnp.allclose(out1, ref_o, atol=1e-4, rtol=1e-4), "relu/bn output mismatch"
    assert jnp.allclose(nm1, ref_m), "relu/bn mask mismatch"

    # 2) decoder-style block with the bf16 default: PartialConv3x3 -> BN ->
    #    LeakyReLU; stage-2 tiles forced small to exercise its own grid.
    out2, nm2 = pcb_activ(x, mask, w3, gamma, beta, activ="leaky",
                          tile_rows=128, tile_rows_stage2=128)
    jax.block_until_ready((out2, nm2))
    ref_o2, ref_m2 = _reference(x, mask, w3, None, gamma, beta,
                                stride=1, padding=1, bn=True, activ="leaky")
    assert jnp.allclose(out2, ref_o2, atol=5e-2, rtol=5e-2), "bf16 leaky mismatch"
    assert jnp.allclose(nm2, ref_m2), "bf16 leaky mask mismatch"

    # 3) final 'dec_1'-style block: PartialConv3x3 with bias, no BN, no activation.
    out3, nm3 = pcb_activ(x, mask, w3, conv_bias=bias, bn=False, activ=None,
                          tile_rows=96, compute_dtype=jnp.float32)
    ref_o3, ref_m3 = _reference(x, mask, w3, bias, None, None,
                                stride=1, padding=1, bn=False, activ=None)
    assert jnp.allclose(out3, ref_o3, atol=1e-4, rtol=1e-4), "biased conv mismatch"
    assert jnp.allclose(nm3, ref_m3), "biased conv mask mismatch"

    # 4) 'down-5' encoder block: PartialConv5x5 stride-2 -> BN -> ReLU (f32 path).
    out4, nm4 = pcb_activ(x, mask, w5, gamma, beta, kernel_size=5, stride=2,
                          padding=2, tile_rows=64, compute_dtype=jnp.float32)
    ref_o4, ref_m4 = _reference(x, mask, w5, None, gamma, beta,
                                stride=2, padding=2, bn=True, activ="relu")
    assert out4.shape == (N, COUT, H // 2, W // 2)
    assert jnp.allclose(out4, ref_o4, atol=1e-4, rtol=1e-4), "down-5 mismatch"
    assert jnp.allclose(nm4, ref_m4), "down-5 mask mismatch"

    jax.block_until_ready((out3, nm3, out4, nm4))
    print("KERNEL_OK")
</pallas_src>

<mosaic_0001>
module attributes {stable_mosaic.version = 11 : i64} {
  func.func @_probe_copy_kernel(%arg0: i32, %arg1: memref<8x128xf32, #tpu.memory_space<vmem>>, %arg2: memref<8x128xf32, #tpu.memory_space<vmem>>) attributes {dimension_semantics = [#tpu.dimension_semantics<arbitrary>], iteration_bounds = array<i64: 2>, scalar_prefetch = 0 : i64, scratch_operands = 0 : i64, tpu.core_type = #tpu.core_type<tc>, window_params = [{pipeline_mode = #tpu.pipeline_mode<synchronous>, transform_indices = @transform_0, window_bounds = array<i64: 8, 128>}, {transform_indices = @transform_1, window_bounds = array<i64: 8, 128>}]} {
    %c0 = arith.constant 0 : index
    %c0_0 = arith.constant 0 : index
    %0 = vector.load %arg1[%c0, %c0_0] : memref<8x128xf32, #tpu.memory_space<vmem>>, vector<8x128xf32>
    %c0_1 = arith.constant 0 : index
    %c0_2 = arith.constant 0 : index
    %1 = vector.load %arg2[%c0_1, %c0_2] : memref<8x128xf32, #tpu.memory_space<vmem>>, vector<8x128xf32>
    tpu.vector_store %arg2[%c0_1, %c0_2], %0 {strides = array<i32>} : memref<8x128xf32, #tpu.memory_space<vmem>>, vector<8x128xf32>,
    return
  }
  func.func @transform_0(%arg0: i32) -> (i32, i32) {
    %c0_i32 = arith.constant 0 : i32
    %c0_i32_0 = arith.constant 0 : i32
    %c0_i32_1 = arith.constant 0 : i32
    return %c0_i32, %c0_i32_0 : i32, i32
  }
  func.func @transform_1(%arg0: i32) -> (i32, i32) {
    %c0_i32 = arith.constant 0 : i32
    %c0_i32_0 = arith.constant 0 : i32
    return %arg0, %c0_i32 : i32, i32
  }
}

module attributes {stable_mosaic.version = 11 : i64} {
  func.func @_pconv_stage1_kernel(%arg0: i32, %arg1: memref<96x128xf32, #tpu.memory_space<vmem>>, %arg2: memref<96x1xf32, #tpu.memory_space<vmem>>, %arg3: memref<128x128xf32, #tpu.memory_space<vmem>>, %arg4: memref<1x128xf32, #tpu.memory_space<vmem>>, %arg5: memref<96x128xf32, #tpu.memory_space<vmem>>, %arg6: memref<1x8x128xf32, #tpu.memory_space<vmem>>) attributes {dimension_semantics = [#tpu.dimension_semantics<parallel>], iteration_bounds = array<i64: 6>, scalar_prefetch = 0 : i64, scratch_operands = 0 : i64, tpu.core_type = #tpu.core_type<tc>, window_params = [{transform_indices = @transform_0, window_bounds = array<i64: 96, 128>}, {transform_indices = @transform_1, window_bounds = array<i64: 96, 1>}, {pipeline_mode = #tpu.pipeline_mode<synchronous>, transform_indices = @transform_2, window_bounds = array<i64: 128, 128>}, {pipeline_mode = #tpu.pipeline_mode<synchronous>, transform_indices = @transform_3, window_bounds = array<i64: 1, 128>}, {transform_indices = @transform_4, window_bounds = array<i64: 96, 128>}, {transform_indices = @transform_5, window_bounds = array<i64: 1, 8, 128>}]} {
    %c0 = arith.constant 0 : index
    %c0_0 = arith.constant 0 : index
    %0 = vector.load %arg1[%c0, %c0_0] : memref<96x128xf32, #tpu.memory_space<vmem>>, vector<96x128xf32>
    %c0_1 = arith.constant 0 : index
    %c0_2 = arith.constant 0 : index
    %1 = vector.load %arg3[%c0_1, %c0_2] : memref<128x128xf32, #tpu.memory_space<vmem>>, vector<128x128xf32>
    %cst = arith.constant dense<0.000000e+00> : vector<96x128xf32>
    %2 = tpu.matmul %0, %1, %cst {dimension_numbers = #tpu.dot_dimension_numbers<[1], [0], [0], [1], [0, 0, 1, 1], [], []>} : vector<96x128xf32>, vector<128x128xf32>, vector<96x128xf32> -> vector<96x128xf32>
    %c0_3 = arith.constant 0 : index
    %c0_4 = arith.constant 0 : index
    %3 = vector.load %arg2[%c0_3, %c0_4] : memref<96x1xf32, #tpu.memory_space<vmem>>, vector<96x1xf32>
    %cst_5 = arith.constant 0.000000e+00 : f32
    %4 = vector.broadcast %cst_5 : f32 to vector<96x1xf32>
    %5 = arith.cmpf oeq, %3, %4 : vector<96x1xf32>
    %cst_6 = arith.constant 1.000000e+00 : f32
    %6 = vector.broadcast %cst_6 : f32 to vector<96x1xf32>
    %7 = arith.select %5, %6, %3 : vector<96x1xi1>, vector<96x1xf32>
    %8 = tpu.reciprocal %7 {approx = true} : vector<96x1xf32> -> vector<96x1xf32>
    %9 = arith.mulf %7, %8 : vector<96x1xf32>
    %cst_7 = arith.constant 2.000000e+00 : f32
    %10 = vector.broadcast %cst_7 : f32 to vector<96x1xf32>
    %11 = arith.subf %10, %9 : vector<96x1xf32>
    %12 = arith.mulf %8, %11 : vector<96x1xf32>
    %13 = vector.broadcast %12 : vector<96x1xf32> to vector<96x128xf32>
    %14 = arith.mulf %2, %13 : vector<96x128xf32>
    %c0_8 = arith.constant 0 : index
    %c0_9 = arith.constant 0 : index
    %15 = vector.load %arg4[%c0_8, %c0_9] : memref<1x128xf32, #tpu.memory_space<vmem>>, vector<1x128xf32>
    %16 = vector.broadcast %15 : vector<1x128xf32> to vector<96x128xf32>
    %17 = arith.addf %14, %16 : vector<96x128xf32>
    %cst_10 = arith.constant 0.000000e+00 : f32
    %18 = vector.shape_cast %5 : vector<96x1xi1> to vector<96x1xi1>
    %19 = vector.broadcast %18 : vector<96x1xi1> to vector<96x128xi1>
    %20 = vector.broadcast %cst_10 : f32 to vector<96x128xf32>
    %21 = arith.select %19, %20, %17 : vector<96x128xi1>, vector<96x128xf32>
    %c0_11 = arith.constant 0 : index
    %c0_12 = arith.constant 0 : index
    %22 = vector.load %arg5[%c0_11, %c0_12] : memref<96x128xf32, #tpu.memory_space<vmem>>, vector<96x128xf32>
    tpu.vector_store %arg5[%c0_11, %c0_12], %21 {strides = array<i32>} : memref<96x128xf32, #tpu.memory_space<vmem>>, vector<96x128xf32>,
    %cst_13 = arith.constant 0.000000e+00 : f32
    %23 = vector.broadcast %cst_13 : f32 to vector<1x8x128xf32>
    %c0_14 = arith.constant 0 : index
    %c0_15 = arith.constant 0 : index
    %c0_16 = arith.constant 0 : index
    %24 = vector.load %arg6[%c0_14, %c0_15, %c0_16] : memref<1x8x128xf32, #tpu.memory_space<vmem>>, vector<1x8x128xf32>
    tpu.vector_store %arg6[%c0_14, %c0_15, %c0_16], %23 {strides = array<i32>} : memref<1x8x128xf32, #tpu.memory_space<vmem>>, vector<1x8x128xf32>,
    %cst_17 = arith.constant dense<0.000000e+00> : vector<128xf32>
    %25 = vector.multi_reduction <add>, %21, %cst_17 [0] : vector<96x128xf32> to vector<128xf32>
    %26 = vector.shape_cast %25 : vector<128xf32> to vector<1x128xf32>
    %c0_18 = arith.constant 0 : index
    %c0_19 = arith.constant 0 : index
    %c0_20 = arith.constant 0 : index
    %27 = vector.load %arg6[%c0_18, %c0_19, %c0_20] : memref<1x8x128xf32, #tpu.memory_space<vmem>>, vector<1x1x128xf32>
    %28 = vector.shape_cast %27 : vector<1x1x128xf32> to vector<1x128xf32>
    %29 = vector.shape_cast %26 : vector<1x128xf32> to vector<1x1x128xf32>
    tpu.vector_store %arg6[%c0_18, %c0_19, %c0_20], %29 {strides = array<i32>} : memref<1x8x128xf32, #tpu.memory_space<vmem>>, vector<1x1x128xf32>,
    %30 = arith.mulf %21, %21 : vector<96x128xf32>
    %cst_21 = arith.constant dense<0.000000e+00> : vector<128xf32>
    %31 = vector.multi_reduction <add>, %30, %cst_21 [0] : vector<96x128xf32> to vector<128xf32>
    %32 = vector.shape_cast %31 : vector<128xf32> to vector<1x128xf32>
    %c0_22 = arith.constant 0 : index
    %c1 = arith.constant 1 : index
    %c0_23 = arith.constant 0 : index
    %33 = vector.load %arg6[%c0_22, %c1, %c0_23] : memref<1x8x128xf32, #tpu.memory_space<vmem>>, vector<1x1x128xf32>
    %34 = vector.shape_cast %33 : vector<1x1x128xf32> to vector<1x128xf32>
    %35 = vector.shape_cast %32 : vector<1x128xf32> to vector<1x1x128xf32>
    tpu.vector_store %arg6[%c0_22, %c1, %c0_23], %35 {strides = array<i32>} : memref<1x8x128xf32, #tpu.memory_space<vmem>>, vector<1x1x128xf32>,
    return
  }
  func.func @transform_0(%arg0: i32) -> (i32, i32) {
    %c0_i32 = arith.constant 0 : i32
    %c0_i32_0 = arith.constant 0 : i32
    return %arg0, %c0_i32 : i32, i32
  }
  func.func @transform_1(%arg0: i32) -> (i32, i32) {
    %c0_i32 = arith.constant 0 : i32
    %c0_i32_0 = arith.constant 0 : i32
    return %arg0, %c0_i32 : i32, i32
  }
  func.func @transform_2(%arg0: i32) -> (i32, i32) {
    %c0_i32 = arith.constant 0 : i32
    %c0_i32_0 = arith.constant 0 : i32
    %c0_i32_1 = arith.constant 0 : i32
    return %c0_i32, %c0_i32_0 : i32, i32
  }
  func.func @transform_3(%arg0: i32) -> (i32, i32) {
    %c0_i32 = arith.constant 0 : i32
    %c0_i32_0 = arith.constant 0 : i32
    %c0_i32_1 = arith.constant 0 : i32
    return %c0_i32, %c0_i32_0 : i32, i32
  }
  func.func @transform_4(%arg0: i32) -> (i32, i32) {
    %c0_i32 = arith.constant 0 : i32
    %c0_i32_0 = arith.constant 0 : i32
    return %arg0, %c0_i32 : i32, i32
  }
  func.func @transform_5(%arg0: i32) -> (i32, i32, i32) {
    %c0_i32 = arith.constant 0 : i32
    %c0_i32_0 = arith.constant 0 : i32
    %c0_i32_1 = arith.constant 0 : i32
    return %arg0, %c0_i32, %c0_i32_0 : i32, i32, i32
  }
}

</mosaic_0001>

<llo_original>
// kernel: tpu_custom_call.1
$region0: #{tpu_custom_call.1}
  #allocation0 [shape = 'u32[]', space=smem, size = 0x4, offset = 0x4, fixed_abs, tag = 'smem constant byte address 0x4 - core index']
  #allocation1 [shape = 'u32[144,128]{1,0:T(1,128)}', space=vmem, size = 0x12000, scoped, tag = 'internal scratch']
  %s0 = inlined_call_operand.hbm [shape: f32[8,128], index: 0, kind: input, shape index: {}]
  %s1 = inlined_call_operand.hbm [shape: f32[16,128], index: 1, kind: output, shape index: {}]
  %s2 = sld [smem:[#allocation0]]
  $region41: #{tpu_custom_call.1} parent=0
    _
  %s4 = ssub.s32 1, %s2
  %s5 = scalar_select 0, %s4, %s2
  $region1: #{tpu_custom_call.1} parent=0
    #allocation2 [shape = 'u8[4096]{0}', space=vmem, size = 0x1000, scoped, tag = 'input window, operand 0, single buffered']
    #allocation3 [shape = 's32[2]{0}', space=sflag, size = 0x8, scoped, tag = 'scoped memory for tpu_custom_call.1']
    #allocation4 [shape = 's32[2]{0}', space=sflag, size = 0x8, scoped, tag = 'scoped memory for tpu_custom_call.1']
    #allocation5 [shape = 'u8[8192]{0}', space=vmem, size = 0x2000, scoped, tag = 'output window, operand 0']
    %6 = vsyncpa [#allocation3], 0
    %7 = vsyncpa [#allocation4], 0
    %s8 = scalar_lea.sflag [#allocation4], 1
    %9 = vsyncpa %s8, 0
    loop: start=0, step=1, limit=4
    $region2: #{tpu_custom_call.1} parent=1 // loop_pre_header
      _
    $region3: #{tpu_custom_call.1} parent=1 // loop_header
      %s11 = sphi 0, %s15
      %p12 = scmp.ge.s32.totalorder %s11, 4
      %s19 = sphi 0, %s19
      %s21 = sphi 0, %s19
      %s22 = sphi 0, %s21
      %s36 = sphi 0, %s22
      %s42 = sphi 0, %s44
      %s45 = sphi 0, %s42
      %s46 = sphi 0, %s45
      %s62 = sphi 0, %s46
    $region4: #{tpu_custom_call.1} parent=1 // loop_header_branch
      %14 = sbr.rel (%p12) target = $region8
    $region5: #{tpu_custom_call.1} parent=1 // loop_body
      %s16 = ssub.s32 %s11, 1
      %s17 = ssub.s32 %s11, 2
      %s18 = sadd.s32 %s11, 1
      %s20 = sadd.s32 %s19, 1
      %p23 = scmp.eq.s32.totalorder %s11, 1
      %p24 = scmp.ne.s32.totalorder %s19, %s21
      %p25 = scmp.eq.s32.totalorder %s11, 0
      %p26 = por %p24, %p25
      %p27 = scmp.ne.s32.totalorder %s19, %s21
      %p28 = scmp.eq.s32.totalorder %s16, 1
      %p29 = por %p27, %p28
      %p30 = scmp.ne.s32.totalorder %s21, %s22
      %p31 = scmp.eq.s32.totalorder %s16, 0
      %p32 = por %p30, %p31
      %p33 = scmp.ne.s32.totalorder %s21, %s22
      %p34 = scmp.eq.s32.totalorder %s17, 1
      %p35 = por %p33, %p34
      %p37 = scmp.ne.s32.totalorder %s22, %s36
      %p38 = scmp.eq.s32.totalorder %s17, 0
      %p39 = por %p37, %p38
      %s40 = ssub.s32 %s11, %s18
      %p41 = scmp.eq.s32.totalorder %s40, 0
      %s43 = sadd.s32 %s42, 1
      %s44 = scalar_select %p41, %s42, %s43
      %p47 = pneg %p41
      %p48 = scmp.eq.s32.totalorder %s11, 1
      %p49 = por %p47, %p48
      %p50 = scmp.ne.s32.totalorder %s42, %s45
      %p51 = scmp.eq.s32.totalorder %s11, 0
      %p52 = por %p50, %p51
      %p53 = scmp.ne.s32.totalorder %s42, %s45
      %p54 = scmp.eq.s32.totalorder %s16, 1
      %p55 = por %p53, %p54
      %p56 = scmp.ne.s32.totalorder %s45, %s46
      %p57 = scmp.eq.s32.totalorder %s16, 0
      %p58 = por %p56, %p57
      %p59 = scmp.ne.s32.totalorder %s45, %s46
      %p60 = scmp.eq.s32.totalorder %s17, 1
      %p61 = por %p59, %p60
      %p63 = scmp.ne.s32.totalorder %s46, %s62
      %p64 = scmp.eq.s32.totalorder %s17, 0
      %p65 = por %p63, %p64
      %p66 = scmp.le.s32.totalorder 1, %s11
      %p67 = scmp.lt.s32.totalorder %s11, 3
      %p68 = pnand %p66, %p67
      %p69 = pneg %p68
      // Predicated region
      $region9: #{tpu_custom_call.1} parent=5 // pred_check
        _
      $region10: #{tpu_custom_call.1} parent=5 // pred_check_branch
        %71 = sbr.rel (%p68) target = $region12
      $region11: #{tpu_custom_call.1} parent=5 // pred_region
        %s72 = ssub.s32 %s11, 1
        // Predicated region
        $region13: #{tpu_custom_call.1} parent=11 // pred_check
          %p73 = pneg %p32
        $region14: #{tpu_custom_call.1} parent=11 // pred_check_branch
          %75 = sbr.rel (%p73) target = $region16
        $region15: #{tpu_custom_call.1} parent=11 // pred_region
          %s77 = ssub.s32 128, 128
          %78 = vsyncadd [#allocation3], %s77
          %s80 = sshll.u32 [#allocation2], 4
          %s81 = int_to_ptr.vmem [resolvable:$true] %s80
          %83 = dma.hbm_to_vmem [thread:$0]  %s0, 128, %s81, [#allocation3]
        $region16: #{tpu_custom_call.1} parent=11 // pred_fallthru
          _
      $region12: #{tpu_custom_call.1} parent=5 // pred_fallthru
        _
      %p84 = scmp.lt.s32.totalorder %s11, 2
      // Predicated region
      $region17: #{tpu_custom_call.1} parent=5 // pred_check
        %p85 = pneg %p84
      $region18: #{tpu_custom_call.1} parent=5 // pred_check_branch
        %87 = sbr.rel (%p85) target = $region20
      $region19: #{tpu_custom_call.1} parent=5 // pred_region
        _
      $region20: #{tpu_custom_call.1} parent=5 // pred_fallthru
        _
      %p88 = scmp.le.s32.totalorder 1, %s11
      %p89 = scmp.lt.s32.totalorder %s11, 3
      %p90 = pnand %p88, %p89
      %p91 = pneg %p90
      // Predicated region
      $region21: #{tpu_custom_call.1} parent=5 // pred_check
        _
      $region22: #{tpu_custom_call.1} parent=5 // pred_check_branch
        %93 = sbr.rel (%p90) target = $region24
      $region23: #{tpu_custom_call.1} parent=5 // pred_region
        %s94 = ssub.s32 %s11, 1
        // Predicated region
        $region25: #{tpu_custom_call.1} parent=23 // pred_check
          %p95 = pneg %p32
        $region26: #{tpu_custom_call.1} parent=23 // pred_check_branch
          %97 = sbr.rel (%p95) target = $region28
        $region27: #{tpu_custom_call.1} parent=23 // pred_region
          %98 = dma.done [#allocation3], 128
        $region28: #{tpu_custom_call.1} parent=23 // pred_fallthru
          _
        %p99 = pneg %p32
        %p100 = pneg %p29
        %p101 = pneg %p58
        %p102 = pneg %p55
        %s103 = sand.u32 %s45, 1
        %s104 = scalar_lea.sflag [#allocation4], %s103
        %s105 = sand.u32 %s45, 1
        %s106 = smul.addr %s105, 8
        %s107 = scalar_lea.vmem [#allocation5], %s106
        %v108 = vld [vmem:[#allocation2] sm:$0xff]
        %109 = vst [vmem:[%s107] sm:$0xff] %v108
        %s110 = sand.u32 %s45, 1
        %s111 = scalar_lea.sflag [#allocation4], %s110
        %s112 = sand.u32 %s45, 1
        %s113 = smul.addr %s112, 8
        %s114 = scalar_lea.vmem [#allocation5], %s113
        // Predicated region
        $region29: #{tpu_custom_call.1} parent=23 // pred_check
          %p115 = pneg %p55
        $region30: #{tpu_custom_call.1} parent=23 // pred_check_branch
          %117 = sbr.rel (%p115) target = $region32
        $region31: #{tpu_custom_call.1} parent=23 // pred_region
          %s119 = ssub.s32 128, 128
          %120 = vsyncadd %s111, %s119
          %s121 = smul.addr %s16, 128
          %s122 = scalar_lea.hbm %s1, %s121
          %s124 = sshll.u32 %s114, 4
          %s125 = int_to_ptr.vmem [resolvable:$true] %s124
          %127 = dma.vmem_to_hbm [thread:$0]  %s125, 128, %s122, %s111
        $region32: #{tpu_custom_call.1} parent=23 // pred_fallthru
          _
      $region24: #{tpu_custom_call.1} parent=5 // pred_fallthru
        _
      %p128 = scmp.le.s32.totalorder 2, %s11
      // Predicated region
      $region33: #{tpu_custom_call.1} parent=5 // pred_check
        %p129 = pneg %p128
      $region34: #{tpu_custom_call.1} parent=5 // pred_check_branch
        %131 = sbr.rel (%p129) target = $region36
      $region35: #{tpu_custom_call.1} parent=5 // pred_region
        %s132 = ssub.s32 %s11, 2
        // Predicated region
        $region37: #{tpu_custom_call.1} parent=35 // pred_check
          %p133 = pneg %p61
        $region38: #{tpu_custom_call.1} parent=35 // pred_check_branch
          %135 = sbr.rel (%p133) target = $region40
        $region39: #{tpu_custom_call.1} parent=35 // pred_region
          %s136 = sand.u32 %s46, 1
          %s137 = scalar_lea.sflag [#allocation4], %s136
          %s138 = sand.u32 %s46, 1
          %s139 = smul.addr %s138, 8
          %s140 = scalar_lea.vmem [#allocation5], %s139
          %141 = dma.done %s137, 128
        $region40: #{tpu_custom_call.1} parent=35 // pred_fallthru
          _
      $region36: #{tpu_custom_call.1} parent=5 // pred_fallthru
        _
    $region6: #{tpu_custom_call.1} parent=1 // loop_footer
      %s15 = sadd.s32 1, %s11
    $region7: #{tpu_custom_call.1} parent=1 // loop_footer_branch
      %10 = sbr.rel target = $region3
    $region8: #{tpu_custom_call.1} parent=1 // loop_exit
      _
    %142 = vsyncpa [#allocation3], 1
    %s143 = scalar_lea.sflag [#allocation3], 1
    %144 = vsyncpa %s143, 1
    %145 = vsyncpa [#allocation4], 1
    %s146 = scalar_lea.sflag [#allocation4], 1
    %147 = vsyncpa %s146, 1

// kernel: tpu_custom_call.1
$region0: #{tpu_custom_call.1}
  #allocation0 [shape = 'u32[]', space=smem, size = 0x4, offset = 0x4, fixed_abs, tag = 'smem constant byte address 0x4 - core index']
  #allocation1 [shape = 'u32[144,128]{1,0:T(1,128)}', space=vmem, size = 0x12000, scoped, tag = 'internal scratch']
  %s0 = inlined_call_operand.vmem [shape: f32[576,128], index: 0, kind: input, shape index: {}]
  %s1 = inlined_call_operand.vmem [shape: f32[576,1], index: 1, kind: input, shape index: {}]
  %s2 = inlined_call_operand.hbm [shape: f32[128,128], index: 2, kind: input, shape index: {}]
  %s3 = inlined_call_operand.vmem [shape: f32[1,128], index: 3, kind: input, shape index: {}]
  %s4 = inlined_call_operand.hbm [shape: f32[576,128], index: 4, kind: output, shape index: {0}]
  %s5 = inlined_call_operand.hbm [shape: f32[6,8,128], index: 5, kind: output, shape index: {1}]
  %6 = xla_tuple %s4, %s5
  %s7 = sld [smem:[#allocation0]]
  $region61: #{tpu_custom_call.1} parent=0
    _
  %s9 = ssub.s32 1, %s7
  %s10 = scalar_select 0, %s9, %s7
  $region1: #{tpu_custom_call.1} parent=0
    #allocation2 [shape = 'u8[65536]{0}', space=vmem, size = 0x10000, scoped, tag = 'input window, operand 2, single buffered']
    #allocation3 [shape = 's32[2]{0}', space=sflag, size = 0x8, scoped, tag = 'scoped memory for tpu_custom_call.1']
    #allocation4 [shape = 's32[2]{0}', space=sflag, size = 0x8, scoped, tag = 'scoped memory for tpu_custom_call.1']
    #allocation5 [shape = 'u8[98304]{0}', space=vmem, size = 0x18000, scoped, tag = 'output window, operand 0']
    #allocation6 [shape = 'u8[8192]{0}', space=vmem, size = 0x2000, scoped, tag = 'output window, operand 1']
    #allocation7 [shape = 's32[2]{0}', space=sflag, size = 0x8, scoped, tag = 'scoped memory for tpu_custom_call.1']
    %11 = vsyncpa [#allocation3], 0
    %12 = vsyncpa [#allocation4], 0
    %s13 = scalar_lea.sflag [#allocation4], 1
    %14 = vsyncpa %s13, 0
    %15 = vsyncpa [#allocation7], 0
    %s16 = scalar_lea.sflag [#allocation7], 1
    %17 = vsyncpa %s16, 0
    loop: start=0, step=1, limit=8
    $region2: #{tpu_custom_call.1} parent=1 // loop_pre_header
      _
    $region3: #{tpu_custom_call.1} parent=1 // loop_header
      %s19 = sphi 0, %s23
      %p20 = scmp.ge.s32.totalorder %s19, 8
      %s29 = sphi 0, %s31
      %s32 = sphi 0, %s29
      %s33 = sphi 0, %s32
      %s49 = sphi 0, %s33
      %s55 = sphi 0, %s57
      %s58 = sphi 0, %s55
      %s59 = sphi 0, %s58
      %s75 = sphi 0, %s59
      %s79 = sphi 0, %s79
      %s81 = sphi 0, %s79
      %s82 = sphi 0, %s81
      %s96 = sphi 0, %s82
      %s100 = sphi 0, %s100
      %s102 = sphi 0, %s100
      %s103 = sphi 0, %s102
      %s117 = sphi 0, %s103
      %s123 = sphi 0, %s125
      %s126 = sphi 0, %s123
      %s127 = sphi 0, %s126
      %s143 = sphi 0, %s127
      %s149 = sphi 0, %s151
      %s152 = sphi 0, %s149
      %s153 = sphi 0, %s152
      %s169 = sphi 0, %s153
    $region4: #{tpu_custom_call.1} parent=1 // loop_header_branch
      %22 = sbr.rel (%p20) target = $region8
    $region5: #{tpu_custom_call.1} parent=1 // loop_body
      %s24 = ssub.s32 %s19, 1
      %s25 = ssub.s32 %s19, 2
      %s26 = sadd.s32 %s19, 1
      %s27 = ssub.s32 %s19, %s26
      %p28 = scmp.eq.s32.totalorder %s27, 0
      %s30 = sadd.s32 %s29, 1
      %s31 = scalar_select %p28, %s29, %s30
      %p34 = pneg %p28
      %p35 = scmp.eq.s32.totalorder %s19, 5
      %p36 = por %p34, %p35
      %p37 = scmp.ne.s32.totalorder %s29, %s32
      %p38 = scmp.eq.s32.totalorder %s19, 0
      %p39 = por %p37, %p38
      %p40 = scmp.ne.s32.totalorder %s29, %s32
      %p41 = scmp.eq.s32.totalorder %s24, 5
      %p42 = por %p40, %p41
      %p43 = scmp.ne.s32.totalorder %s32, %s33
      %p44 = scmp.eq.s32.totalorder %s24, 0
      %p45 = por %p43, %p44
      %p46 = scmp.ne.s32.totalorder %s32, %s33
      %p47 = scmp.eq.s32.totalorder %s25, 5
      %p48 = por %p46, %p47
      %p50 = scmp.ne.s32.totalorder %s33, %s49
      %p51 = scmp.eq.s32.totalorder %s25, 0
      %p52 = por %p50, %p51
      %s53 = ssub.s32 %s19, %s26
      %p54 = scmp.eq.s32.totalorder %s53, 0
      %s56 = sadd.s32 %s55, 1
      %s57 = scalar_select %p54, %s55, %s56
      %p60 = pneg %p54
      %p61 = scmp.eq.s32.totalorder %s19, 5
      %p62 = por %p60, %p61
      %p63 = scmp.ne.s32.totalorder %s55, %s58
      %p64 = scmp.eq.s32.totalorder %s19, 0
      %p65 = por %p63, %p64
      %p66 = scmp.ne.s32.totalorder %s55, %s58
      %p67 = scmp.eq.s32.totalorder %s24, 5
      %p68 = por %p66, %p67
      %p69 = scmp.ne.s32.totalorder %s58, %s59
      %p70 = scmp.eq.s32.totalorder %s24, 0
      %p71 = por %p69, %p70
      %p72 = scmp.ne.s32.totalorder %s58, %s59
      %p73 = scmp.eq.s32.totalorder %s25, 5
      %p74 = por %p72, %p73
      %p76 = scmp.ne.s32.totalorder %s59, %s75
      %p77 = scmp.eq.s32.totalorder %s25, 0
      %p78 = por %p76, %p77
      %s80 = sadd.s32 %s79, 1
      %p83 = scmp.eq.s32.totalorder %s19, 5
      %p84 = scmp.ne.s32.totalorder %s79, %s81
      %p85 = scmp.eq.s32.totalorder %s19, 0
      %p86 = por %p84, %p85
      %p87 = scmp.ne.s32.totalorder %s79, %s81
      %p88 = scmp.eq.s32.totalorder %s24, 5
      %p89 = por %p87, %p88
      %p90 = scmp.ne.s32.totalorder %s81, %s82
      %p91 = scmp.eq.s32.totalorder %s24, 0
      %p92 = por %p90, %p91
      %p93 = scmp.ne.s32.totalorder %s81, %s82
      %p94 = scmp.eq.s32.totalorder %s25, 5
      %p95 = por %p93, %p94
      %p97 = scmp.ne.s32.totalorder %s82, %s96
      %p98 = scmp.eq.s32.totalorder %s25, 0
      %p99 = por %p97, %p98
      %s101 = sadd.s32 %s100, 1
      %p104 = scmp.eq.s32.totalorder %s19, 5
      %p105 = scmp.ne.s32.totalorder %s100, %s102
      %p106 = scmp.eq.s32.totalorder %s19, 0
      %p107 = por %p105, %p106
      %p108 = scmp.ne.s32.totalorder %s100, %s102
      %p109 = scmp.eq.s32.totalorder %s24, 5
      %p110 = por %p108, %p109
      %p111 = scmp.ne.s32.totalorder %s102, %s103
      %p112 = scmp.eq.s32.totalorder %s24, 0
      %p113 = por %p111, %p112
      %p114 = scmp.ne.s32.totalorder %s102, %s103
      %p115 = scmp.eq.s32.totalorder %s25, 5
      %p116 = por %p114, %p115
      %p118 = scmp.ne.s32.totalorder %s103, %s117
      %p119 = scmp.eq.s32.totalorder %s25, 0
      %p120 = por %p118, %p119
      %s121 = ssub.s32 %s19, %s26
      %p122 = scmp.eq.s32.totalorder %s121, 0
      %s124 = sadd.s32 %s123, 1
      %s125 = scalar_select %p122, %s123, %s124
      %p128 = pneg %p122
      %p129 = scmp.eq.s32.totalorder %s19, 5
      %p130 = por %p128, %p129
      %p131 = scmp.ne.s32.totalorder %s123, %s126
      %p132 = scmp.eq.s32.totalorder %s19, 0
      %p133 = por %p131, %p132
      %p134 = scmp.ne.s32.totalorder %s123, %s126
      %p135 = scmp.eq.s32.totalorder %s24, 5
      %p136 = por %p134, %p135
      %p137 = scmp.ne.s32.totalorder %s126, %s127
      %p138 = scmp.eq.s32.totalorder %s24, 0
      %p139 = por %p137, %p138
      %p140 = scmp.ne.s32.totalorder %s126, %s127
      %p141 = scmp.eq.s32.totalorder %s25, 5
      %p142 = por %p140, %p141
      %p144 = scmp.ne.s32.totalorder %s127, %s143
      %p145 = scmp.eq.s32.totalorder %s25, 0
      %p146 = por %p144, %p145
      %s147 = ssub.s32 %s19, %s26
      %p148 = scmp.eq.s32.totalorder %s147, 0
      %s150 = sadd.s32 %s149, 1
      %s151 = scalar_select %p148, %s149, %s150
      %p154 = pneg %p148
      %p155 = scmp.eq.s32.totalorder %s19, 5
      %p156 = por %p154, %p155
      %p157 = scmp.ne.s32.totalorder %s149, %s152
      %p158 = scmp.eq.s32.totalorder %s19, 0
      %p159 = por %p157, %p158
      %p160 = scmp.ne.s32.totalorder %s149, %s152
      %p161 = scmp.eq.s32.totalorder %s24, 5
      %p162 = por %p160, %p161
      %p163 = scmp.ne.s32.totalorder %s152, %s153
      %p164 = scmp.eq.s32.totalorder %s24, 0
      %p165 = por %p163, %p164
      %p166 = scmp.ne.s32.totalorder %s152, %s153
      %p167 = scmp.eq.s32.totalorder %s25, 5
      %p168 = por %p166, %p167
      %p170 = scmp.ne.s32.totalorder %s153, %s169
      %p171 = scmp.eq.s32.totalorder %s25, 0
      %p172 = por %p170, %p171
      %p173 = scmp.le.s32.totalorder 1, %s19
      %p174 = scmp.lt.s32.totalorder %s19, 7
      %p175 = pnand %p173, %p174
      %p176 = pneg %p175
      // Predicated region
      $region9: #{tpu_custom_call.1} parent=5 // pred_check
        _
      $region10: #{tpu_custom_call.1} parent=5 // pred_check_branch
        %178 = sbr.rel (%p175) target = $region12
      $region11: #{tpu_custom_call.1} parent=5 // pred_region
        %s179 = ssub.s32 %s19, 1
        // Predicated region
        $region13: #{tpu_custom_call.1} parent=11 // pred_check
          %p180 = pneg %p92
        $region14: #{tpu_custom_call.1} parent=11 // pred_check_branch
          %182 = sbr.rel (%p180) target = $region16
        $region15: #{tpu_custom_call.1} parent=11 // pred_region
          %s184 = ssub.s32 2048, 2048
          %185 = vsyncadd [#allocation3], %s184
          %s186 = sshll.u32 [#allocation2], 4
          %s187 = int_to_ptr.vmem [resolvable:$true] %s186
          %192 = dma.hbm_to_vmem [thread:$0]  %s2, 2048, %s187, [#allocation3], 128, 128, 8
        $region16: #{tpu_custom_call.1} parent=11 // pred_fallthru
          _
        // Predicated region
        $region17: #{tpu_custom_call.1} parent=11 // pred_check
          %p193 = pneg %p113
        $region18: #{tpu_custom_call.1} parent=11 // pred_check_branch
          %195 = sbr.rel (%p193) target = $region20
        $region19: #{tpu_custom_call.1} parent=11 // pred_region
          _
        $region20: #{tpu_custom_call.1} parent=11 // pred_fallthru
          _
      $region12: #{tpu_custom_call.1} parent=5 // pred_fallthru
        _
      %p196 = scmp.lt.s32.totalorder %s19, 6
      // Predicated region
      $region21: #{tpu_custom_call.1} parent=5 // pred_check
        %p197 = pneg %p196
      $region22: #{tpu_custom_call.1} parent=5 // pred_check_branch
        %199 = sbr.rel (%p197) target = $region24
      $region23: #{tpu_custom_call.1} parent=5 // pred_region
        // Predicated region
        $region25: #{tpu_custom_call.1} parent=23 // pred_check
          %p200 = pneg %p39
        $region26: #{tpu_custom_call.1} parent=23 // pred_check_branch
          %202 = sbr.rel (%p200) target = $region28
        $region27: #{tpu_custom_call.1} parent=23 // pred_region
          %s203 = smul.u32 12, %s19
          %p204 = scmp.lt.s32.totalorder %s203, 71
          %s205 = scalar_select %p204, %s203, 71
          %s206 = smul.addr %s205, 8
          %s207 = scalar_lea.vmem %s0, %s206
          %s208 = smul.u32 12, %s19
        $region28: #{tpu_custom_call.1} parent=23 // pred_fallthru
          _
        // Predicated region
        $region29: #{tpu_custom_call.1} parent=23 // pred_check
          %p209 = pneg %p65
        $region30: #{tpu_custom_call.1} parent=23 // pred_check_branch
          %211 = sbr.rel (%p209) target = $region32
        $region31: #{tpu_custom_call.1} parent=23 // pred_region
          %s212 = smul.u32 12, %s19
          %p213 = scmp.lt.s32.totalorder %s212, 71
          %s214 = scalar_select %p213, %s212, 71
          %s215 = smul.addr %s214, 8
          %s216 = scalar_lea.vmem %s1, %s215
          %s217 = smul.u32 12, %s19
        $region32: #{tpu_custom_call.1} parent=23 // pred_fallthru
          _
      $region24: #{tpu_custom_call.1} parent=5 // pred_fallthru
        _
      %p218 = scmp.le.s32.totalorder 1, %s19
      %p219 = scmp.lt.s32.totalorder %s19, 7
      %p220 = pnand %p218, %p219
      %p221 = pneg %p220
      // Predicated region
      $region33: #{tpu_custom_call.1} parent=5 // pred_check
        _
      $region34: #{tpu_custom_call.1} parent=5 // pred_check_branch
        %223 = sbr.rel (%p220) target = $region36
      $region35: #{tpu_custom_call.1} parent=5 // pred_region
        %s224 = ssub.s32 %s19, 1
        // Predicated region
        $region37: #{tpu_custom_call.1} parent=35 // pred_check
          %p225 = pneg %p92
        $region38: #{tpu_custom_call.1} parent=35 // pred_check_branch
          %227 = sbr.rel (%p225) target = $region40
        $region39: #{tpu_custom_call.1} parent=35 // pred_region
          %228 = dma.done [#allocation3], 2048
        $region40: #{tpu_custom_call.1} parent=35 // pred_fallthru
          _
        %s229 = smul.u32 12, %s24
        %p230 = scmp.lt.s32.totalorder %s229, 71
        %s231 = scalar_select %p230, %s229, 71
        %s232 = smul.addr %s231, 8
        %s233 = scalar_lea.vmem %s0, %s232
        %p234 = pneg %p45
        %p235 = pneg %p42
        %s236 = smul.u32 12, %s24
        %p237 = scmp.lt.s32.totalorder %s236, 71
        %s238 = scalar_select %p237, %s236, 71
        %s239 = smul.addr %s238, 8
        %s240 = scalar_lea.vmem %s1, %s239
        %p241 = pneg %p71
        %p242 = pneg %p68
        %p243 = pneg %p92
        %p244 = pneg %p89
        %p245 = pneg %p113
        %p246 = pneg %p110
        %p247 = pneg %p139
        %p248 = pneg %p136
        %s249 = sand.u32 %s126, 1
        %s250 = scalar_lea.sflag [#allocation4], %s249
        %s251 = sand.u32 %s126, 1
        %s252 = smul.addr %s251, 96
        %s253 = scalar_lea.vmem [#allocation5], %s252
        %p254 = pneg %p165
        %p255 = pneg %p162
        %s256 = sand.u32 %s152, 1
        %s257 = scalar_lea.sflag [#allocation7], %s256
        %s258 = sand.u32 %s152, 1
        %s259 = smul.addr %s258, 8
        %s260 = scalar_lea.vmem [#allocation6], %s259
        %s261 = smul.u32 12, %s24
        %p262 = scmp.lt.s32.totalorder %s261, 71
        %s263 = scalar_select %p262, %s261, 71
        %s264 = smul.addr %s263, 8
        %s265 = scalar_lea.vmem %s0, %s264
        %s266 = smul.u32 12, %s24
        %s267 = smul.u32 12, %s24
        %p268 = scmp.lt.s32.totalorder %s267, 71
        %s269 = scalar_select %p268, %s267, 71
        %s270 = smul.addr %s269, 8
        %s271 = scalar_lea.vmem %s1, %s270
        %s272 = smul.u32 12, %s24
        %s273 = smul.u32 12, %s24
        %v274 = vld [vmem:[%s265] sm:$0xff]
        %v275 = vld [vmem:[%s265 + $0x8] sm:$0xff]
        %v276 = vld [vmem:[%s265 + $0x10] sm:$0xff]
        %v277 = vld [vmem:[%s265 + $0x18] sm:$0xff]
        %v278 = vld [vmem:[%s265 + $0x20] sm:$0xff]
        %v279 = vld [vmem:[%s265 + $0x28] sm:$0xff]
        %v280 = vld [vmem:[%s265 + $0x30] sm:$0xff]
        %v281 = vld [vmem:[%s265 + $0x38] sm:$0xff]
        %v282 = vld [vmem:[%s265 + $0x40] sm:$0xff]
        %v283 = vld [vmem:[%s265 + $0x48] sm:$0xff]
        %v284 = vld [vmem:[%s265 + $0x50] sm:$0xff]
        %v285 = vld [vmem:[%s265 + $0x58] sm:$0xff]
        %v286 = vld [vmem:[#allocation2] sm:$0xff]
        %v287 = vld [vmem:[#allocation2 + $0x8] sm:$0xff]
        %v288 = vld [vmem:[#allocation2 + $0x10] sm:$0xff]
        %v289 = vld [vmem:[#allocation2 + $0x18] sm:$0xff]
        %v290 = vld [vmem:[#allocation2 + $0x20] sm:$0xff]
        %v291 = vld [vmem:[#allocation2 + $0x28] sm:$0xff]
        %v292 = vld [vmem:[#allocation2 + $0x30] sm:$0xff]
        %v293 = vld [vmem:[#allocation2 + $0x38] sm:$0xff]
        %v294 = vld [vmem:[#allocation2 + $0x40] sm:$0xff]
        %v295 = vld [vmem:[#allocation2 + $0x48] sm:$0xff]
        %v296 = vld [vmem:[#allocation2 + $0x50] sm:$0xff]
        %v297 = vld [vmem:[#allocation2 + $0x58] sm:$0xff]
        %v298 = vld [vmem:[#allocation2 + $0x60] sm:$0xff]
        %v299 = vld [vmem:[#allocation2 + $0x68] sm:$0xff]
        %v300 = vld [vmem:[#allocation2 + $0x70] sm:$0xff]
        %v301 = vld [vmem:[#allocation2 + $0x78] sm:$0xff]
        %302 = vmatprep.subr.mxu0 0.0
        %303 = vmatpush1.msra.mxu0 %v286
        %304 = vmatprep.subr.mxu0 0.0
        %305 = vmatpush1.msra.mxu0 %v287
        %306 = vmatprep.subr.mxu0 0.0
        %307 = vmatpush1.msra.mxu0 %v288
        %308 = vmatprep.subr.mxu0 0.0
        %309 = vmatpush1.msra.mxu0 %v289
        %310 = vmatprep.subr.mxu0 0.0
        %311 = vmatpush1.msra.mxu0 %v290
        %312 = vmatprep.subr.mxu0 0.0
        %313 = vmatpush1.msra.mxu0 %v291
        %314 = vmatprep.subr.mxu0 0.0
        %315 = vmatpush1.msra.mxu0 %v292
        %316 = vmatprep.subr.mxu0 0.0
        %317 = vmatpush1.msra.mxu0 %v293
        %318 = vmatprep.subr.mxu0 0.0
        %319 = vmatpush1.msra.mxu0 %v294
        %320 = vmatprep.subr.mxu0 0.0
        %321 = vmatpush1.msra.mxu0 %v295
        %322 = vmatprep.subr.mxu0 0.0
        %323 = vmatpush1.msra.mxu0 %v296
        %324 = vmatprep.subr.mxu0 0.0
        %325 = vmatpush1.msra.mxu0 %v297
        %326 = vmatprep.subr.mxu0 0.0
        %327 = vmatpush1.msra.mxu0 %v298
        %328 = vmatprep.subr.mxu0 0.0
        %329 = vmatpush1.msra.mxu0 %v299
        %330 = vmatprep.subr.mxu0 0.0
        %331 = vmatpush1.msra.mxu0 %v300
        %332 = vmatprep.subr.mxu0 0.0
        %333 = vmatpush1.msra.mxu0 %v301
        %334 = vmatprep.subr.mxu0 0.0
        %335 = vmatpush1.msra.mxu0 0.0
        %336 = vmatprep.subr.mxu0 0.0
        %337 = vmatpush1.msra.mxu0 0.0
        %338 = vmatprep.subr.mxu0 0.0
        %339 = vmatpush1.msra.mxu0 0.0
        %340 = vmatprep.subr.mxu0 0.0
        %341 = vmatpush1.msra.mxu0 0.0
        %342 = vmatprep.subr.mxu0 0.0
        %343 = vmatpush1.msra.mxu0 0.0
        %344 = vmatprep.subr.mxu0 0.0
        %345 = vmatpush1.msra.mxu0 0.0
        %346 = vmatprep.subr.mxu0 0.0
        %347 = vmatpush1.msra.mxu0 0.0
        %348 = vmatprep.subr.mxu0 0.0
        %349 = vmatpush1.msra.mxu0 0.0
        %350 = vmatprep.subr.mxu0 0.0
        %351 = vmatpush1.msra.mxu0 0.0
        %352 = vmatprep.subr.mxu0 0.0
        %353 = vmatpush1.msra.mxu0 0.0
        %354 = vmatprep.subr.mxu0 0.0
        %355 = vmatpush1.msra.mxu0 0.0
        %356 = vmatprep.subr.mxu0 0.0
        %357 = vmatpush1.msra.mxu0 0.0
        %358 = vmatprep.subr.mxu0 0.0
        %359 = vmatpush1.msra.mxu0 0.0
        %360 = vmatprep.subr.mxu0 0.0
        %361 = vmatpush1.msra.mxu0 0.0
        %362 = vmatprep.subr.mxu0 0.0
        %363 = vmatpush1.msra.mxu0 0.0
        %364 = vmatprep.subr.mxu0 0.0
        %365 = vmatpush1.msra.mxu0 0.0
        %366 = vmatprep.mubr.f32.mxu0 0.0
        %367 = vmatmul.mubr.f32.gmra.mrb[0].mxu0 %v274
        %v368 = vpop.f32.mrb[0].mxu0
        %v369 = vadd.f32 0.0, %v368
        %v370 = vpop.f32.mrb[0].mxu0
        %371 = vmatprep.mubr.f32.mxu0 0.0
        %372 = vmatmul.mubr.f32.gmra.mrb[0].mxu0 %v275
        %v373 = vpop.f32.mrb[0].mxu0
        %v374 = vadd.f32 0.0, %v373
        %v375 = vpop.f32.mrb[0].mxu0
        %376 = vmatprep.mubr.f32.mxu0 0.0
        %377 = vmatmul.mubr.f32.gmra.mrb[0].mxu0 %v276
        %v378 = vpop.f32.mrb[0].mxu0
        %v379 = vadd.f32 0.0, %v378
        %v380 = vpop.f32.mrb[0].mxu0
        %381 = vmatprep.mubr.f32.mxu0 0.0
        %382 = vmatmul.mubr.f32.gmra.mrb[0].mxu0 %v277
        %v383 = vpop.f32.mrb[0].mxu0
        %v384 = vadd.f32 0.0, %v383
        %v385 = vpop.f32.mrb[0].mxu0
        %386 = vmatprep.mubr.f32.mxu0 0.0
        %387 = vmatmul.mubr.f32.gmra.mrb[0].mxu0 %v278
        %v388 = vpop.f32.mrb[0].mxu0
        %v389 = vadd.f32 0.0, %v388
        %v390 = vpop.f32.mrb[0].mxu0
        %391 = vmatprep.mubr.f32.mxu0 0.0
        %392 = vmatmul.mubr.f32.gmra.mrb[0].mxu0 %v279
        %v393 = vpop.f32.mrb[0].mxu0
        %v394 = vadd.f32 0.0, %v393
        %v395 = vpop.f32.mrb[0].mxu0
        %396 = vmatprep.mubr.f32.mxu0 0.0
        %397 = vmatmul.mubr.f32.gmra.mrb[0].mxu0 %v280
        %v398 = vpop.f32.mrb[0].mxu0
        %v399 = vadd.f32 0.0, %v398
        %v400 = vpop.f32.mrb[0].mxu0
        %401 = vmatprep.mubr.f32.mxu0 0.0
        %402 = vmatmul.mubr.f32.gmra.mrb[0].mxu0 %v281
        %v403 = vpop.f32.mrb[0].mxu0
        %v404 = vadd.f32 0.0, %v403
        %v405 = vpop.f32.mrb[0].mxu0
        %406 = vmatprep.mubr.f32.mxu0 0.0
        %407 = vmatmul.mubr.f32.gmra.mrb[0].mxu0 %v282
        %v408 = vpop.f32.mrb[0].mxu0
        %v409 = vadd.f32 0.0, %v408
        %v410 = vpop.f32.mrb[0].mxu0
        %411 = vmatprep.mubr.f32.mxu0 0.0
        %412 = vmatmul.mubr.f32.gmra.mrb[0].mxu0 %v283
        %v413 = vpop.f32.mrb[0].mxu0
        %v414 = vadd.f32 0.0, %v413
        %v415 = vpop.f32.mrb[0].mxu0
        %416 = vmatprep.mubr.f32.mxu0 0.0
        %417 = vmatmul.mubr.f32.gmra.mrb[0].mxu0 %v284
        %v418 = vpop.f32.mrb[0].mxu0
        %v419 = vadd.f32 0.0, %v418
        %v420 = vpop.f32.mrb[0].mxu0
        %421 = vmatprep.mubr.f32.mxu0 0.0
        %422 = vmatmul.mubr.f32.gmra.mrb[0].mxu0 %v285
        %v423 = vpop.f32.mrb[0].mxu0
        %v424 = vadd.f32 0.0, %v423
        %v425 = vpop.f32.mrb[0].mxu0
        %426 = vdwg.mxu0
        %v427 = vld [vmem:[%s271] sm:$0xff]
        %v428 = vld [vmem:[%s271 + $0x8] sm:$0xff]
        %v429 = vld [vmem:[%s271 + $0x10] sm:$0xff]
        %v430 = vld [vmem:[%s271 + $0x18] sm:$0xff]
        %v431 = vld [vmem:[%s271 + $0x20] sm:$0xff]
        %v432 = vld [vmem:[%s271 + $0x28] sm:$0xff]
        %v433 = vld [vmem:[%s271 + $0x30] sm:$0xff]
        %v434 = vld [vmem:[%s271 + $0x38] sm:$0xff]
        %v435 = vld [vmem:[%s271 + $0x40] sm:$0xff]
        %v436 = vld [vmem:[%s271 + $0x48] sm:$0xff]
        %v437 = vld [vmem:[%s271 + $0x50] sm:$0xff]
        %v438 = vld [vmem:[%s271 + $0x58] sm:$0xff]
        %vm439 = vcmp.eq.f32.partialorder %v427, 0.0
        %vm440 = vcmp.eq.f32.partialorder %v428, 0.0
        %vm441 = vcmp.eq.f32.partialorder %v429, 0.0
        %vm442 = vcmp.eq.f32.partialorder %v430, 0.0
        %vm443 = vcmp.eq.f32.partialorder %v431, 0.0
        %vm444 = vcmp.eq.f32.partialorder %v432, 0.0
        %vm445 = vcmp.eq.f32.partialorder %v433, 0.0
        %vm446 = vcmp.eq.f32.partialorder %v434, 0.0
        %vm447 = vcmp.eq.f32.partialorder %v435, 0.0
        %vm448 = vcmp.eq.f32.partialorder %v436, 0.0
        %vm449 = vcmp.eq.f32.partialorder %v437, 0.0
        %vm450 = vcmp.eq.f32.partialorder %v438, 0.0
        %v451 = vsel %vm439, 1.0, %v427
        %v452 = vsel %vm440, 1.0, %v428
        %v453 = vsel %vm441, 1.0, %v429
        %v454 = vsel %vm442, 1.0, %v430
        %v455 = vsel %vm443, 1.0, %v431
        %v456 = vsel %vm444, 1.0, %v432
        %v457 = vsel %vm445, 1.0, %v433
        %v458 = vsel %vm446, 1.0, %v434
        %v459 = vsel %vm447, 1.0, %v435
        %v460 = vsel %vm448, 1.0, %v436
        %v461 = vsel %vm449, 1.0, %v437
        %v462 = vsel %vm450, 1.0, %v438
        %v463 = vrcp.pop %v451
        %v464 = vrcp.pop %v452
        %v465 = vrcp.pop %v453
        %v466 = vrcp.pop %v454
        %v467 = vrcp.pop %v455
        %v468 = vrcp.pop %v456
        %v469 = vrcp.pop %v457
        %v470 = vrcp.pop %v458
        %v471 = vrcp.pop %v459
        %v472 = vrcp.pop %v460
        %v473 = vrcp.pop %v461
        %v474 = vrcp.pop %v462
        %v475 = vmul.f32 %v451, %v463
        %v476 = vmul.f32 %v452, %v464
        %v477 = vmul.f32 %v453, %v465
        %v478 = vmul.f32 %v454, %v466
        %v479 = vmul.f32 %v455, %v467
        %v480 = vmul.f32 %v456, %v468
        %v481 = vmul.f32 %v457, %v469
        %v482 = vmul.f32 %v458, %v470
        %v483 = vmul.f32 %v459, %v471
        %v484 = vmul.f32 %v460, %v472
        %v485 = vmul.f32 %v461, %v473
        %v486 = vmul.f32 %v462, %v474
        %v487 = vsub.f32 2.0, %v475
        %v488 = vsub.f32 2.0, %v476
        %v489 = vsub.f32 2.0, %v477
        %v490 = vsub.f32 2.0, %v478
        %v491 = vsub.f32 2.0, %v479
        %v492 = vsub.f32 2.0, %v480
        %v493 = vsub.f32 2.0, %v481
        %v494 = vsub.f32 2.0, %v482
        %v495 = vsub.f32 2.0, %v483
        %v496 = vsub.f32 2.0, %v484
        %v497 = vsub.f32 2.0, %v485
        %v498 = vsub.f32 2.0, %v486
        %v499 = vmul.f32 %v463, %v487
        %v500 = vmul.f32 %v464, %v488
        %v501 = vmul.f32 %v465, %v489
        %v502 = vmul.f32 %v466, %v490
        %v503 = vmul.f32 %v467, %v491
        %v504 = vmul.f32 %v468, %v492
        %v505 = vmul.f32 %v469, %v493
        %v506 = vmul.f32 %v470, %v494
        %v507 = vmul.f32 %v471, %v495
        %v508 = vmul.f32 %v472, %v496
        %v509 = vmul.f32 %v473, %v497
        %v510 = vmul.f32 %v474, %v498
        %512 = vset.pattern.permute.xlu0 0
        %513 = vperm.xlu0 %512, %v499
        %v514 = vpop.permute.xlu0 %513
        %517 = vset.pattern.permute.xlu0 0
        %518 = vperm.xlu0 %517, %v500
        %v519 = vpop.permute.xlu0 %518
        %522 = vset.pattern.permute.xlu0 0
        %523 = vperm.xlu0 %522, %v501
        %v524 = vpop.permute.xlu0 %523
        %527 = vset.pattern.permute.xlu0 0
        %528 = vperm.xlu0 %527, %v502
        %v529 = vpop.permute.xlu0 %528
        %532 = vset.pattern.permute.xlu0 0
        %533 = vperm.xlu0 %532, %v503
        %v534 = vpop.permute.xlu0 %533
        %537 = vset.pattern.permute.xlu0 0
        %538 = vperm.xlu0 %537, %v504
        %v539 = vpop.permute.xlu0 %538
        %542 = vset.pattern.permute.xlu0 0
        %543 = vperm.xlu0 %542, %v505
        %v544 = vpop.permute.xlu0 %543
        %547 = vset.pattern.permute.xlu0 0
        %548 = vperm.xlu0 %547, %v506
        %v549 = vpop.permute.xlu0 %548
        %552 = vset.pattern.permute.xlu0 0
        %553 = vperm.xlu0 %552, %v507
        %v554 = vpop.permute.xlu0 %553
        %557 = vset.pattern.permute.xlu0 0
        %558 = vperm.xlu0 %557, %v508
        %v559 = vpop.permute.xlu0 %558
        %562 = vset.pattern.permute.xlu0 0
        %563 = vperm.xlu0 %562, %v509
        %v564 = vpop.permute.xlu0 %563
        %567 = vset.pattern.permute.xlu0 0
        %568 = vperm.xlu0 %567, %v510
        %v569 = vpop.permute.xlu0 %568
        %v571 = vmul.f32 %v369, %v514
        %v572 = vmul.f32 %v374, %v519
        %v573 = vmul.f32 %v379, %v524
        %v574 = vmul.f32 %v384, %v529
        %v575 = vmul.f32 %v389, %v534
        %v576 = vmul.f32 %v394, %v539
        %v577 = vmul.f32 %v399, %v544
        %v578 = vmul.f32 %v404, %v549
        %v579 = vmul.f32 %v409, %v554
        %v580 = vmul.f32 %v414, %v559
        %v581 = vmul.f32 %v419, %v564
        %v582 = vmul.f32 %v424, %v569
        %v583 = vld [vmem:[%s3] sm:$0x1]
        %v585 = vlaneseq
        %v586 = vshrl.u32 %v585, 7
        %v587 = vsub.s32 0, %v586
        %v588 = vrot.slane %v583, %v587
        %v590 = vadd.f32 %v571, %v588
        %v591 = vadd.f32 %v572, %v588
        %v592 = vadd.f32 %v573, %v588
        %v593 = vadd.f32 %v574, %v588
        %v594 = vadd.f32 %v575, %v588
        %v595 = vadd.f32 %v576, %v588
        %v596 = vadd.f32 %v577, %v588
        %v597 = vadd.f32 %v578, %v588
        %v598 = vadd.f32 %v579, %v588
        %v599 = vadd.f32 %v580, %v588
        %v600 = vadd.f32 %v581, %v588
        %v601 = vadd.f32 %v582, %v588
        %v602 = vsel %vm439, 1, 0
        %v603 = vsel %vm440, 1, 0
        %v604 = vsel %vm441, 1, 0
        %v605 = vsel %vm442, 1, 0
        %v606 = vsel %vm443, 1, 0
        %v607 = vsel %vm444, 1, 0
        %v608 = vsel %vm445, 1, 0
        %v609 = vsel %vm446, 1, 0
        %v610 = vsel %vm447, 1, 0
        %v611 = vsel %vm448, 1, 0
        %v612 = vsel %vm449, 1, 0
        %v613 = vsel %vm450, 1, 0
        %614 = vset.pattern.permute.xlu0 0
        %615 = vperm.xlu0 %614, %v602
        %v616 = vpop.permute.xlu0 %615
        %617 = vset.pattern.permute.xlu0 0
        %618 = vperm.xlu0 %617, %v603
        %v619 = vpop.permute.xlu0 %618
        %620 = vset.pattern.permute.xlu0 0
        %621 = vperm.xlu0 %620, %v604
        %v622 = vpop.permute.xlu0 %621
        %623 = vset.pattern.permute.xlu0 0
        %624 = vperm.xlu0 %623, %v605
        %v625 = vpop.permute.xlu0 %624
        %626 = vset.pattern.permute.xlu0 0
        %627 = vperm.xlu0 %626, %v606
        %v628 = vpop.permute.xlu0 %627
        %629 = vset.pattern.permute.xlu0 0
        %630 = vperm.xlu0 %629, %v607
        %v631 = vpop.permute.xlu0 %630
        %632 = vset.pattern.permute.xlu0 0
        %633 = vperm.xlu0 %632, %v608
        %v634 = vpop.permute.xlu0 %633
        %635 = vset.pattern.permute.xlu0 0
        %636 = vperm.xlu0 %635, %v609
        %v637 = vpop.permute.xlu0 %636
        %638 = vset.pattern.permute.xlu0 0
        %639 = vperm.xlu0 %638, %v610
        %v640 = vpop.permute.xlu0 %639
        %641 = vset.pattern.permute.xlu0 0
        %642 = vperm.xlu0 %641, %v611
        %v643 = vpop.permute.xlu0 %642
        %644 = vset.pattern.permute.xlu0 0
        %645 = vperm.xlu0 %644, %v612
        %v646 = vpop.permute.xlu0 %645
        %647 = vset.pattern.permute.xlu0 0
        %648 = vperm.xlu0 %647, %v613
        %v649 = vpop.permute.xlu0 %648
        %vm650 = vcmp.eq.s32.totalorder %v616, 1
        %vm651 = vcmp.eq.s32.totalorder %v619, 1
        %vm652 = vcmp.eq.s32.totalorder %v622, 1
        %vm653 = vcmp.eq.s32.totalorder %v625, 1
        %vm654 = vcmp.eq.s32.totalorder %v628, 1
        %vm655 = vcmp.eq.s32.totalorder %v631, 1
        %vm656 = vcmp.eq.s32.totalorder %v634, 1
        %vm657 = vcmp.eq.s32.totalorder %v637, 1
        %vm658 = vcmp.eq.s32.totalorder %v640, 1
        %vm659 = vcmp.eq.s32.totalorder %v643, 1
        %vm660 = vcmp.eq.s32.totalorder %v646, 1
        %vm661 = vcmp.eq.s32.totalorder %v649, 1
        %v662 = vsel %vm650, 0.0, %v590
        %v663 = vsel %vm651, 0.0, %v591
        %v664 = vsel %vm652, 0.0, %v592
        %v665 = vsel %vm653, 0.0, %v593
        %v666 = vsel %vm654, 0.0, %v594
        %v667 = vsel %vm655, 0.0, %v595
        %v668 = vsel %vm656, 0.0, %v596
        %v669 = vsel %vm657, 0.0, %v597
        %v670 = vsel %vm658, 0.0, %v598
        %v671 = vsel %vm659, 0.0, %v599
        %v672 = vsel %vm660, 0.0, %v600
        %v673 = vsel %vm661, 0.0, %v601
        %674 = vst [vmem:[%s253] sm:$0xff] %v662
        %675 = vst [vmem:[%s253 + $0x8] sm:$0xff] %v663
        %676 = vst [vmem:[%s253 + $0x10] sm:$0xff] %v664
        %677 = vst [vmem:[%s253 + $0x18] sm:$0xff] %v665
        %678 = vst [vmem:[%s253 + $0x20] sm:$0xff] %v666
        %679 = vst [vmem:[%s253 + $0x28] sm:$0xff] %v667
        %680 = vst [vmem:[%s253 + $0x30] sm:$0xff] %v668
        %681 = vst [vmem:[%s253 + $0x38] sm:$0xff] %v669
        %682 = vst [vmem:[%s253 + $0x40] sm:$0xff] %v670
        %683 = vst [vmem:[%s253 + $0x48] sm:$0xff] %v671
        %684 = vst [vmem:[%s253 + $0x50] sm:$0xff] %v672
        %685 = vst [vmem:[%s253 + $0x58] sm:$0xff] %v673
        %686 = vst [vmem:[%s260] sm:$0xff] 0.0
        %v687 = vadd.f32 %v662, %v663
        %v688 = vadd.f32 %v687, %v664
        %v689 = vadd.f32 %v688, %v665
        %v690 = vadd.f32 %v689, %v666
        %v691 = vadd.f32 %v690, %v667
        %v692 = vadd.f32 %v691, %v668
        %v693 = vadd.f32 %v692, %v669
        %v694 = vadd.f32 %v693, %v670
        %v695 = vadd.f32 %v694, %v671
        %v696 = vadd.f32 %v695, %v672
        %v697 = vadd.f32 %v696, %v673
        %v698 = vrot.slane %v697, 4
        %v699 = vadd.f32 %v697, %v698
        %v700 = vrot.slane %v699, 2
        %v701 = vadd.f32 %v699, %v700
        %v702 = vrot.slane %v701, 1
        %v703 = vadd.f32 %v701, %v702
        %704 = vst [vmem:[%s260] sm:$0x1] %v703
        %v705 = vmul.f32 %v662, %v662
        %v706 = vmul.f32 %v663, %v663
        %v707 = vmul.f32 %v664, %v664
        %v708 = vmul.f32 %v665, %v665
        %v709 = vmul.f32 %v666, %v666
        %v710 = vmul.f32 %v667, %v667
        %v711 = vmul.f32 %v668, %v668
        %v712 = vmul.f32 %v669, %v669
        %v713 = vmul.f32 %v670, %v670
        %v714 = vmul.f32 %v671, %v671
        %v715 = vmul.f32 %v672, %v672
        %v716 = vmul.f32 %v673, %v673
        %v717 = vadd.f32 %v705, %v706
        %v718 = vadd.f32 %v717, %v707
        %v719 = vadd.f32 %v718, %v708
        %v720 = vadd.f32 %v719, %v709
        %v721 = vadd.f32 %v720, %v710
        %v722 = vadd.f32 %v721, %v711
        %v723 = vadd.f32 %v722, %v712
        %v724 = vadd.f32 %v723, %v713
        %v725 = vadd.f32 %v724, %v714
        %v726 = vadd.f32 %v725, %v715
        %v727 = vadd.f32 %v726, %v716
        %v728 = vrot.slane %v727, 4
        %v729 = vadd.f32 %v727, %v728
        %v730 = vrot.slane %v729, 2
        %v731 = vadd.f32 %v729, %v730
        %v732 = vrot.slane %v731, 1
        %v733 = vadd.f32 %v731, %v732
        %734 = vst [vmem:[%s260 + $0x1] sm:$0x1] %v733
        %s735 = sand.u32 %s126, 1
        %s736 = scalar_lea.sflag [#allocation4], %s735
        %s737 = sand.u32 %s126, 1
        %s738 = smul.addr %s737, 96
        %s739 = scalar_lea.vmem [#allocation5], %s738
        %s740 = sand.u32 %s152, 1
        %s741 = scalar_lea.sflag [#allocation7], %s740
        %s742 = sand.u32 %s152, 1
        %s743 = smul.addr %s742, 8
        %s744 = scalar_lea.vmem [#allocation6], %s743
        // Predicated region
        $region41: #{tpu_custom_call.1} parent=35 // pred_check
          %p745 = pneg %p136
        $region42: #{tpu_custom_call.1} parent=35 // pred_check_branch
          %747 = sbr.rel (%p745) target = $region44
        $region43: #{tpu_custom_call.1} parent=35 // pred_region
          %s748 = smul.u32 12, %s24
          %s750 = ssub.s32 1536, 1536
          %751 = vsyncadd %s736, %s750
          %s752 = smul.addr %s748, 128
          %s753 = scalar_lea.hbm %s4, %s752
          %s754 = sshll.u32 %s739, 4
          %s755 = int_to_ptr.vmem [resolvable:$true] %s754
          %760 = dma.vmem_to_hbm [thread:$0]  %s755, 1536, %s753, %s736, 128, 128, 8
        $region44: #{tpu_custom_call.1} parent=35 // pred_fallthru
          _
        // Predicated region
        $region45: #{tpu_custom_call.1} parent=35 // pred_check
          %p761 = pneg %p162
        $region46: #{tpu_custom_call.1} parent=35 // pred_check_branch
          %763 = sbr.rel (%p761) target = $region48
        $region47: #{tpu_custom_call.1} parent=35 // pred_region
          %s765 = ssub.s32 128, 128
          %766 = vsyncadd %s741, %s765
          %s767 = smul.addr %s24, 128
          %s768 = scalar_lea.hbm %s5, %s767
          %s770 = sshll.u32 %s744, 4
          %s771 = int_to_ptr.vmem [resolvable:$true] %s770
          %773 = dma.vmem_to_hbm [thread:$0]  %s771, 128, %s768, %s741
        $region48: #{tpu_custom_call.1} parent=35 // pred_fallthru
          _
      $region36: #{tpu_custom_call.1} parent=5 // pred_fallthru
        _
      %p774 = scmp.le.s32.totalorder 2, %s19
      // Predicated region
      $region49: #{tpu_custom_call.1} parent=5 // pred_check
        %p775 = pneg %p774
      $region50: #{tpu_custom_call.1} parent=5 // pred_check_branch
        %777 = sbr.rel (%p775) target = $region52
      $region51: #{tpu_custom_call.1} parent=5 // pred_region
        %s778 = ssub.s32 %s19, 2
        // Predicated region
        $region53: #{tpu_custom_call.1} parent=51 // pred_check
          %p779 = pneg %p142
        $region54: #{tpu_custom_call.1} parent=51 // pred_check_branch
          %781 = sbr.rel (%p779) target = $region56
        $region55: #{tpu_custom_call.1} parent=51 // pred_region
          %s782 = sand.u32 %s127, 1
          %s783 = scalar_lea.sflag [#allocation4], %s782
          %s784 = sand.u32 %s127, 1
          %s785 = smul.addr %s784, 96
          %s786 = scalar_lea.vmem [#allocation5], %s785
          %787 = dma.done %s783, 1536
        $region56: #{tpu_custom_call.1} parent=51 // pred_fallthru
          _
        // Predicated region
        $region57: #{tpu_custom_call.1} parent=51 // pred_check
          %p788 = pneg %p168
        $region58: #{tpu_custom_call.1} parent=51 // pred_check_branch
          %790 = sbr.rel (%p788) target = $region60
        $region59: #{tpu_custom_call.1} parent=51 // pred_region
          %s791 = sand.u32 %s153, 1
          %s792 = scalar_lea.sflag [#allocation7], %s791
          %s793 = sand.u32 %s153, 1
          %s794 = smul.addr %s793, 8
          %s795 = scalar_lea.vmem [#allocation6], %s794
          %796 = dma.done %s792, 128
        $region60: #{tpu_custom_call.1} parent=51 // pred_fallthru
          _
      $region52: #{tpu_custom_call.1} parent=5 // pred_fallthru
        _
    $region6: #{tpu_custom_call.1} parent=1 // loop_footer
      %s23 = sadd.s32 1, %s19
    $region7: #{tpu_custom_call.1} parent=1 // loop_footer_branch
      %18 = sbr.rel target = $region3
    $region8: #{tpu_custom_call.1} parent=1 // loop_exit
      _
    %797 = vsyncpa [#allocation3], 1
    %s798 = scalar_lea.sflag [#allocation3], 1
    %799 = vsyncpa %s798, 1
    %800 = vsyncpa [#allocation4], 1
    %s801 = scalar_lea.sflag [#allocation4], 1
    %802 = vsyncpa %s801, 1
    %803 = vsyncpa [#allocation7], 1
    %s804 = scalar_lea.sflag [#allocation7], 1
    %805 = vsyncpa %s804, 1

</llo_original>
